<compile_context>
chip_gen: v5e
topology: v5e:2x2
jax: 0.10.0
libtpu: 0.0.40
codegen_flags: <defaults>
</compile_context>

<pallas_src>
import jax
import jax.numpy as jnp
from jax.experimental import pallas as pl
from jax.experimental.pallas import tpu as pltpu


def _rel_model_kernel(a_ref, x_ref, w1_ref, b1_ref, w2_ref, b2_ref,
                      node_ref, graph_ref):
    """Two GCN-style layers + short_cut residual + mean readout (one graph).

    a_ref:    (N, N)   row-normalized relation-graph adjacency, bf16
    x_ref:    (N, Dp)  initial node features (glorot input, zero-padded), f32
    w*_ref:   (Dp, Dp) layer weights (zero-padded), bf16
    b*_ref:   (1, Dp)  layer biases (zero-padded), f32
    node_ref: (N, Dp)  output node_feature (last hidden), f32
    graph_ref:(1, Dp)  output graph_feature (mean readout), f32
    """
    a = a_ref[...]                       # bf16 (N, N)
    x = x_ref[...]                       # f32  (N, Dp)

    # ---- layer 1: h1 = relu(A @ (x @ W1) + b1) + x (short_cut) ----
    xw1 = jnp.dot(x.astype(jnp.bfloat16), w1_ref[...],
                  preferred_element_type=jnp.float32)
    agg1 = jnp.dot(a, xw1.astype(jnp.bfloat16),
                   preferred_element_type=jnp.float32)
    h1 = jnp.maximum(agg1 + b1_ref[...], 0.0) + x          # f32 epilogue

    # ---- layer 2: h2 = relu(A @ (h1 @ W2) + b2) + h1 (short_cut) ----
    hw2 = jnp.dot(h1.astype(jnp.bfloat16), w2_ref[...],
                  preferred_element_type=jnp.float32)
    agg2 = jnp.dot(a, hw2.astype(jnp.bfloat16),
                   preferred_element_type=jnp.float32)
    h2 = jnp.maximum(agg2 + b2_ref[...], 0.0) + h1          # f32 epilogue

    # concat_hidden=False -> node_feature = last hidden
    node_ref[...] = h2
    # readout = mean over nodes (lane-dense 128-wide store)
    graph_ref[...] = jnp.mean(h2, axis=0, keepdims=True)


@jax.jit
def relation_model_forward(adj, x, w1, b1, w2, b2):
    """Batched forward over B relation graphs sharing one layer stack.

    adj: (B, N, N) f32 row-normalized adjacency
    x:   (B, N, D) f32 initial node features
    w*:  (D, D) f32, b*: (1, D) f32
    Returns node_feature (B, N, D) and graph_feature (B, D), both f32.
    """
    b_sz, n, d = x.shape
    dp = ((d + 127) // 128) * 128        # lane-dense hidden dim

    pad_d = dp - d
    x_p = jnp.pad(x, ((0, 0), (0, 0), (0, pad_d)))
    w1_p = jnp.pad(w1, ((0, pad_d), (0, pad_d))).astype(jnp.bfloat16)
    w2_p = jnp.pad(w2, ((0, pad_d), (0, pad_d))).astype(jnp.bfloat16)
    b1_p = jnp.pad(b1, ((0, 0), (0, pad_d)))
    b2_p = jnp.pad(b2, ((0, 0), (0, pad_d)))
    adj_bf = adj.astype(jnp.bfloat16)    # bf16 MXU operand, halves DMA bytes

    node_p, graph_p = pl.pallas_call(
        _rel_model_kernel,
        out_shape=(
            jax.ShapeDtypeStruct((b_sz, n, dp), jnp.float32),
            jax.ShapeDtypeStruct((b_sz, 1, dp), jnp.float32),
        ),
        grid=(b_sz,),
        in_specs=[
            pl.BlockSpec((None, n, n), lambda b: (b, 0, 0)),     # adj (per graph)
            pl.BlockSpec((None, n, dp), lambda b: (b, 0, 0)),    # x   (per graph)
            pl.BlockSpec((dp, dp), lambda b: (0, 0)),            # w1  (shared)
            pl.BlockSpec((1, dp), lambda b: (0, 0)),             # b1  (shared)
            pl.BlockSpec((dp, dp), lambda b: (0, 0)),            # w2  (shared)
            pl.BlockSpec((1, dp), lambda b: (0, 0)),             # b2  (shared)
        ],
        out_specs=(
            pl.BlockSpec((None, n, dp), lambda b: (b, 0, 0)),    # node_feature
            pl.BlockSpec((None, 1, dp), lambda b: (b, 0, 0)),    # graph_feature
        ),
        compiler_params=pltpu.CompilerParams(
            dimension_semantics=("parallel",)),
    )(adj_bf, x_p, w1_p, b1_p, w2_p, b2_p)

    # Pad columns are zero by construction; slice back to the true hidden dim.
    node_feature = node_p[:, :, :d]
    graph_feature = graph_p[:, 0, :d]
    return {"graph_feature": graph_feature, "node_feature": node_feature}


def _xavier_uniform(key, shape):
    # nn.init.xavier_uniform_ on a 2D tensor: fan_in = shape[-1], fan_out = shape[-2]
    fan_out, fan_in = shape[-2], shape[-1]
    limit = (6.0 / (fan_in + fan_out)) ** 0.5
    return jax.random.uniform(key, shape, jnp.float32, minval=-limit, maxval=limit)


def _reference(adj, x, w1, b1, w2, b2):
    h1 = jnp.maximum(jnp.matmul(jnp.matmul(adj, x), w1) + b1, 0.0) + x
    h2 = jnp.maximum(jnp.matmul(jnp.matmul(adj, h1), w2) + b2, 0.0) + h1
    return {"graph_feature": jnp.mean(h2, axis=1),
            "node_feature": h2}


if __name__ == "__main__":
    B = 2    # batch of relation graphs (amortizes launch cost, feeds both TCs on v7x)
    N = 16   # num_relation -> nodes of the relation graph
    D = 32   # input_dim / hidden_dim

    key = jax.random.PRNGKey(0)
    k_adj, k_x, k_w1, k_w2 = jax.random.split(key, 4)

    # Synthetic relation-graph adjacencies (dense, row-normalized): stand-in
    # for the coalesced sparse A = Ahh + Att of construct_relation_graph.
    logits = jax.random.uniform(k_adj, (B, N, N), jnp.float32)
    mask = (logits > 0.5).astype(jnp.float32)
    mask = mask + jnp.eye(N, dtype=jnp.float32)[None]        # no isolated nodes
    adj = mask / jnp.sum(mask, axis=2, keepdims=True)        # row-normalize

    # input_type='glorot': xavier_uniform_(zeros(num_node, input_dim)) per graph.
    x = _xavier_uniform(k_x, (B, N, D))

    # Two deterministic GCN-style layer parameters (shared across the batch).
    w1 = _xavier_uniform(k_w1, (D, D))
    b1 = jnp.zeros((1, D), jnp.float32)
    w2 = _xavier_uniform(k_w2, (D, D))
    b2 = jnp.zeros((1, D), jnp.float32)

    out = relation_model_forward(adj, x, w1, b1, w2, b2)
    jax.block_until_ready(out)

    ref = _reference(adj, x, w1, b1, w2, b2)
    assert out["node_feature"].shape == (B, N, D)
    assert out["graph_feature"].shape == (B, D)
    # bf16 MXU operands with f32 accumulation -> ~1e-2 relative tolerance.
    assert jnp.allclose(out["node_feature"], ref["node_feature"],
                        atol=5e-2, rtol=5e-2)
    assert jnp.allclose(out["graph_feature"], ref["graph_feature"],
                        atol=5e-2, rtol=5e-2)

    print("KERNEL_OK")
</pallas_src>

<mosaic_0001>
module attributes {stable_mosaic.version = 11 : i64} {
  func.func @_rel_model_kernel(%arg0: i32, %arg1: memref<1x16x16xbf16, #tpu.memory_space<vmem>>, %arg2: memref<1x16x128xf32, #tpu.memory_space<vmem>>, %arg3: memref<128x128xbf16, #tpu.memory_space<vmem>>, %arg4: memref<1x128xf32, #tpu.memory_space<vmem>>, %arg5: memref<128x128xbf16, #tpu.memory_space<vmem>>, %arg6: memref<1x128xf32, #tpu.memory_space<vmem>>, %arg7: memref<1x16x128xf32, #tpu.memory_space<vmem>>, %arg8: memref<1x1x128xf32, #tpu.memory_space<vmem>>) attributes {dimension_semantics = [#tpu.dimension_semantics<parallel>], iteration_bounds = array<i64: 2>, scalar_prefetch = 0 : i64, scratch_operands = 0 : i64, tpu.core_type = #tpu.core_type<tc>, window_params = [{transform_indices = @transform_0, window_bounds = array<i64: 1, 16, 16>}, {transform_indices = @transform_1, window_bounds = array<i64: 1, 16, 128>}, {pipeline_mode = #tpu.pipeline_mode<synchronous>, transform_indices = @transform_2, window_bounds = array<i64: 128, 128>}, {pipeline_mode = #tpu.pipeline_mode<synchronous>, transform_indices = @transform_3, window_bounds = array<i64: 1, 128>}, {pipeline_mode = #tpu.pipeline_mode<synchronous>, transform_indices = @transform_4, window_bounds = array<i64: 128, 128>}, {pipeline_mode = #tpu.pipeline_mode<synchronous>, transform_indices = @transform_5, window_bounds = array<i64: 1, 128>}, {transform_indices = @transform_6, window_bounds = array<i64: 1, 16, 128>}, {transform_indices = @transform_7, window_bounds = array<i64: 1, 1, 128>}]} {
    %c0 = arith.constant 0 : index
    %c0_0 = arith.constant 0 : index
    %c0_1 = arith.constant 0 : index
    %0 = vector.load %arg1[%c0, %c0_0, %c0_1] : memref<1x16x16xbf16, #tpu.memory_space<vmem>>, vector<1x16x16xbf16>
    %1 = vector.shape_cast %0 : vector<1x16x16xbf16> to vector<16x16xbf16>
    %c0_2 = arith.constant 0 : index
    %c0_3 = arith.constant 0 : index
    %c0_4 = arith.constant 0 : index
    %2 = vector.load %arg2[%c0_2, %c0_3, %c0_4] : memref<1x16x128xf32, #tpu.memory_space<vmem>>, vector<1x16x128xf32>
    %3 = vector.shape_cast %2 : vector<1x16x128xf32> to vector<16x128xf32>
    %4 = arith.truncf %3 : vector<16x128xf32> to vector<16x128xbf16>
    %c0_5 = arith.constant 0 : index
    %c0_6 = arith.constant 0 : index
    %5 = vector.load %arg3[%c0_5, %c0_6] : memref<128x128xbf16, #tpu.memory_space<vmem>>, vector<128x128xbf16>
    %cst = arith.constant dense<0.000000e+00> : vector<16x128xf32>
    %6 = tpu.matmul %4, %5, %cst {dimension_numbers = #tpu.dot_dimension_numbers<[1], [0], [0], [1], [0, 0, 1, 1], [], []>} : vector<16x128xbf16>, vector<128x128xbf16>, vector<16x128xf32> -> vector<16x128xf32>
    %7 = arith.truncf %6 : vector<16x128xf32> to vector<16x128xbf16>
    %cst_7 = arith.constant dense<0.000000e+00> : vector<16x128xf32>
    %8 = tpu.matmul %1, %7, %cst_7 {dimension_numbers = #tpu.dot_dimension_numbers<[1], [0], [0], [1], [0, 0, 1, 1], [], []>} : vector<16x16xbf16>, vector<16x128xbf16>, vector<16x128xf32> -> vector<16x128xf32>
    %c0_8 = arith.constant 0 : index
    %c0_9 = arith.constant 0 : index
    %9 = vector.load %arg4[%c0_8, %c0_9] : memref<1x128xf32, #tpu.memory_space<vmem>>, vector<1x128xf32>
    %10 = vector.broadcast %9 : vector<1x128xf32> to vector<16x128xf32>
    %11 = arith.addf %8, %10 : vector<16x128xf32>
    %cst_10 = arith.constant 0.000000e+00 : f32
    %12 = vector.broadcast %cst_10 : f32 to vector<16x128xf32>
    %13 = arith.maximumf %11, %12 : vector<16x128xf32>
    %14 = arith.addf %13, %3 : vector<16x128xf32>
    %15 = arith.truncf %14 : vector<16x128xf32> to vector<16x128xbf16>
    %c0_11 = arith.constant 0 : index
    %c0_12 = arith.constant 0 : index
    %16 = vector.load %arg5[%c0_11, %c0_12] : memref<128x128xbf16, #tpu.memory_space<vmem>>, vector<128x128xbf16>
    %cst_13 = arith.constant dense<0.000000e+00> : vector<16x128xf32>
    %17 = tpu.matmul %15, %16, %cst_13 {dimension_numbers = #tpu.dot_dimension_numbers<[1], [0], [0], [1], [0, 0, 1, 1], [], []>} : vector<16x128xbf16>, vector<128x128xbf16>, vector<16x128xf32> -> vector<16x128xf32>
    %18 = arith.truncf %17 : vector<16x128xf32> to vector<16x128xbf16>
    %cst_14 = arith.constant dense<0.000000e+00> : vector<16x128xf32>
    %19 = tpu.matmul %1, %18, %cst_14 {dimension_numbers = #tpu.dot_dimension_numbers<[1], [0], [0], [1], [0, 0, 1, 1], [], []>} : vector<16x16xbf16>, vector<16x128xbf16>, vector<16x128xf32> -> vector<16x128xf32>
    %c0_15 = arith.constant 0 : index
    %c0_16 = arith.constant 0 : index
    %20 = vector.load %arg6[%c0_15, %c0_16] : memref<1x128xf32, #tpu.memory_space<vmem>>, vector<1x128xf32>
    %21 = vector.broadcast %20 : vector<1x128xf32> to vector<16x128xf32>
    %22 = arith.addf %19, %21 : vector<16x128xf32>
    %cst_17 = arith.constant 0.000000e+00 : f32
    %23 = vector.broadcast %cst_17 : f32 to vector<16x128xf32>
    %24 = arith.maximumf %22, %23 : vector<16x128xf32>
    %25 = arith.addf %24, %14 : vector<16x128xf32>
    %c0_18 = arith.constant 0 : index
    %c0_19 = arith.constant 0 : index
    %c0_20 = arith.constant 0 : index
    %26 = vector.load %arg7[%c0_18, %c0_19, %c0_20] : memref<1x16x128xf32, #tpu.memory_space<vmem>>, vector<1x16x128xf32>
    %27 = vector.shape_cast %26 : vector<1x16x128xf32> to vector<16x128xf32>
    %28 = vector.shape_cast %25 : vector<16x128xf32> to vector<1x16x128xf32>
    tpu.vector_store %arg7[%c0_18, %c0_19, %c0_20], %28 {strides = array<i32>} : memref<1x16x128xf32, #tpu.memory_space<vmem>>, vector<1x16x128xf32>,
    %cst_21 = arith.constant dense<0.000000e+00> : vector<128xf32>
    %29 = vector.multi_reduction <add>, %25, %cst_21 [0] : vector<16x128xf32> to vector<128xf32>
    %30 = vector.shape_cast %29 : vector<128xf32> to vector<1x128xf32>
    %cst_22 = arith.constant 1.600000e+01 : f32
    %31 = vector.broadcast %cst_22 : f32 to vector<1x128xf32>
    %32 = arith.divf %30, %31 : vector<1x128xf32>
    %c0_23 = arith.constant 0 : index
    %c0_24 = arith.constant 0 : index
    %c0_25 = arith.constant 0 : index
    %33 = vector.load %arg8[%c0_23, %c0_24, %c0_25] : memref<1x1x128xf32, #tpu.memory_space<vmem>>, vector<1x1x128xf32>
    %34 = vector.shape_cast %33 : vector<1x1x128xf32> to vector<1x128xf32>
    %35 = vector.shape_cast %32 : vector<1x128xf32> to vector<1x1x128xf32>
    tpu.vector_store %arg8[%c0_23, %c0_24, %c0_25], %35 {strides = array<i32>} : memref<1x1x128xf32, #tpu.memory_space<vmem>>, vector<1x1x128xf32>,
    return
  }
  func.func @transform_0(%arg0: i32) -> (i32, i32, i32) {
    %c0_i32 = arith.constant 0 : i32
    %c0_i32_0 = arith.constant 0 : i32
    %c0_i32_1 = arith.constant 0 : i32
    return %arg0, %c0_i32, %c0_i32_0 : i32, i32, i32
  }
  func.func @transform_1(%arg0: i32) -> (i32, i32, i32) {
    %c0_i32 = arith.constant 0 : i32
    %c0_i32_0 = arith.constant 0 : i32
    %c0_i32_1 = arith.constant 0 : i32
    return %arg0, %c0_i32, %c0_i32_0 : i32, i32, i32
  }
  func.func @transform_2(%arg0: i32) -> (i32, i32) {
    %c0_i32 = arith.constant 0 : i32
    %c0_i32_0 = arith.constant 0 : i32
    %c0_i32_1 = arith.constant 0 : i32
    return %c0_i32, %c0_i32_0 : i32, i32
  }
  func.func @transform_3(%arg0: i32) -> (i32, i32) {
    %c0_i32 = arith.constant 0 : i32
    %c0_i32_0 = arith.constant 0 : i32
    %c0_i32_1 = arith.constant 0 : i32
    return %c0_i32, %c0_i32_0 : i32, i32
  }
  func.func @transform_4(%arg0: i32) -> (i32, i32) {
    %c0_i32 = arith.constant 0 : i32
    %c0_i32_0 = arith.constant 0 : i32
    %c0_i32_1 = arith.constant 0 : i32
    return %c0_i32, %c0_i32_0 : i32, i32
  }
  func.func @transform_5(%arg0: i32) -> (i32, i32) {
    %c0_i32 = arith.constant 0 : i32
    %c0_i32_0 = arith.constant 0 : i32
    %c0_i32_1 = arith.constant 0 : i32
    return %c0_i32, %c0_i32_0 : i32, i32
  }
  func.func @transform_6(%arg0: i32) -> (i32, i32, i32) {
    %c0_i32 = arith.constant 0 : i32
    %c0_i32_0 = arith.constant 0 : i32
    %c0_i32_1 = arith.constant 0 : i32
    return %arg0, %c0_i32, %c0_i32_0 : i32, i32, i32
  }
  func.func @transform_7(%arg0: i32) -> (i32, i32, i32) {
    %c0_i32 = arith.constant 0 : i32
    %c0_i32_0 = arith.constant 0 : i32
    %c0_i32_1 = arith.constant 0 : i32
    return %arg0, %c0_i32, %c0_i32_0 : i32, i32, i32
  }
}

</mosaic_0001>

<llo_original>
// kernel: relation_model_forward.1
$region0: #{relation_model_forward.1}
  #allocation0 [shape = 'u32[]', space=smem, size = 0x4, offset = 0x4, fixed_abs, tag = 'smem constant byte address 0x4 - core index']
  #allocation1 [shape = 'u32[72,128]{1,0:T(1,128)}', space=vmem, size = 0x9000, scoped, tag = 'internal scratch']
  %s0 = inlined_call_operand.vmem [shape: bf16[2,16,16], index: 0, kind: input, shape index: {}]
  %s1 = inlined_call_operand.vmem [shape: f32[2,16,128], index: 1, kind: input, shape index: {}]
  %s2 = inlined_call_operand.vmem [shape: bf16[128,128], index: 2, kind: input, shape index: {}]
  %s3 = inlined_call_operand.vmem [shape: f32[1,128], index: 3, kind: input, shape index: {}]
  %s4 = inlined_call_operand.vmem [shape: bf16[128,128], index: 4, kind: input, shape index: {}]
  %s5 = inlined_call_operand.vmem [shape: f32[1,128], index: 5, kind: input, shape index: {}]
  %s6 = inlined_call_operand.hbm [shape: f32[2,16,128], index: 6, kind: output, shape index: {0}]
  %s7 = inlined_call_operand.hbm [shape: f32[2,1,128], index: 7, kind: output, shape index: {1}]
  %8 = xla_tuple %s6, %s7
  %s9 = sld [smem:[#allocation0]]
  $region65: #{relation_model_forward.1} parent=0
    _
  %s11 = ssub.s32 1, %s9
  %s12 = scalar_select 0, %s11, %s9
  $region1: #{relation_model_forward.1} parent=0
    #allocation2 [shape = 'u8[16384]{0}', space=vmem, size = 0x4000, scoped, tag = 'output window, operand 0']
    #allocation3 [shape = 's32[2]{0}', space=sflag, size = 0x8, scoped, tag = 'scoped memory for relation_model_forward.1']
    #allocation4 [shape = 'u8[1024]{0}', space=vmem, size = 0x400, scoped, tag = 'output window, operand 1']
    #allocation5 [shape = 's32[2]{0}', space=sflag, size = 0x8, scoped, tag = 'scoped memory for relation_model_forward.1']
    %13 = vsyncpa [#allocation3], 0
    %s14 = scalar_lea.sflag [#allocation3], 1
    %15 = vsyncpa %s14, 0
    %16 = vsyncpa [#allocation5], 0
    %s17 = scalar_lea.sflag [#allocation5], 1
    %18 = vsyncpa %s17, 0
    loop: start=0, step=1, limit=4
    $region2: #{relation_model_forward.1} parent=1 // loop_pre_header
      _
    $region3: #{relation_model_forward.1} parent=1 // loop_header
      %s20 = sphi 0, %s24
      %p21 = scmp.ge.s32.totalorder %s20, 4
      %s30 = sphi 0, %s32
      %s33 = sphi 0, %s30
      %s34 = sphi 0, %s33
      %s50 = sphi 0, %s34
      %s56 = sphi 0, %s58
      %s59 = sphi 0, %s56
      %s60 = sphi 0, %s59
      %s76 = sphi 0, %s60
      %s80 = sphi 0, %s80
      %s82 = sphi 0, %s80
      %s83 = sphi 0, %s82
      %s97 = sphi 0, %s83
      %s101 = sphi 0, %s101
      %s103 = sphi 0, %s101
      %s104 = sphi 0, %s103
      %s118 = sphi 0, %s104
      %s122 = sphi 0, %s122
      %s124 = sphi 0, %s122
      %s125 = sphi 0, %s124
      %s139 = sphi 0, %s125
      %s143 = sphi 0, %s143
      %s145 = sphi 0, %s143
      %s146 = sphi 0, %s145
      %s160 = sphi 0, %s146
      %s166 = sphi 0, %s168
      %s169 = sphi 0, %s166
      %s170 = sphi 0, %s169
      %s186 = sphi 0, %s170
      %s192 = sphi 0, %s194
      %s195 = sphi 0, %s192
      %s196 = sphi 0, %s195
      %s212 = sphi 0, %s196
    $region4: #{relation_model_forward.1} parent=1 // loop_header_branch
      %23 = sbr.rel (%p21) target = $region8
    $region5: #{relation_model_forward.1} parent=1 // loop_body
      %s25 = ssub.s32 %s20, 1
      %s26 = ssub.s32 %s20, 2
      %s27 = sadd.s32 %s20, 1
      %s28 = ssub.s32 %s20, %s27
      %p29 = scmp.eq.s32.totalorder %s28, 0
      %s31 = sadd.s32 %s30, 1
      %s32 = scalar_select %p29, %s30, %s31
      %p35 = pneg %p29
      %p36 = scmp.eq.s32.totalorder %s20, 1
      %p37 = por %p35, %p36
      %p38 = scmp.ne.s32.totalorder %s30, %s33
      %p39 = scmp.eq.s32.totalorder %s20, 0
      %p40 = por %p38, %p39
      %p41 = scmp.ne.s32.totalorder %s30, %s33
      %p42 = scmp.eq.s32.totalorder %s25, 1
      %p43 = por %p41, %p42
      %p44 = scmp.ne.s32.totalorder %s33, %s34
      %p45 = scmp.eq.s32.totalorder %s25, 0
      %p46 = por %p44, %p45
      %p47 = scmp.ne.s32.totalorder %s33, %s34
      %p48 = scmp.eq.s32.totalorder %s26, 1
      %p49 = por %p47, %p48
      %p51 = scmp.ne.s32.totalorder %s34, %s50
      %p52 = scmp.eq.s32.totalorder %s26, 0
      %p53 = por %p51, %p52
      %s54 = ssub.s32 %s20, %s27
      %p55 = scmp.eq.s32.totalorder %s54, 0
      %s57 = sadd.s32 %s56, 1
      %s58 = scalar_select %p55, %s56, %s57
      %p61 = pneg %p55
      %p62 = scmp.eq.s32.totalorder %s20, 1
      %p63 = por %p61, %p62
      %p64 = scmp.ne.s32.totalorder %s56, %s59
      %p65 = scmp.eq.s32.totalorder %s20, 0
      %p66 = por %p64, %p65
      %p67 = scmp.ne.s32.totalorder %s56, %s59
      %p68 = scmp.eq.s32.totalorder %s25, 1
      %p69 = por %p67, %p68
      %p70 = scmp.ne.s32.totalorder %s59, %s60
      %p71 = scmp.eq.s32.totalorder %s25, 0
      %p72 = por %p70, %p71
      %p73 = scmp.ne.s32.totalorder %s59, %s60
      %p74 = scmp.eq.s32.totalorder %s26, 1
      %p75 = por %p73, %p74
      %p77 = scmp.ne.s32.totalorder %s60, %s76
      %p78 = scmp.eq.s32.totalorder %s26, 0
      %p79 = por %p77, %p78
      %s81 = sadd.s32 %s80, 1
      %p84 = scmp.eq.s32.totalorder %s20, 1
      %p85 = scmp.ne.s32.totalorder %s80, %s82
      %p86 = scmp.eq.s32.totalorder %s20, 0
      %p87 = por %p85, %p86
      %p88 = scmp.ne.s32.totalorder %s80, %s82
      %p89 = scmp.eq.s32.totalorder %s25, 1
      %p90 = por %p88, %p89
      %p91 = scmp.ne.s32.totalorder %s82, %s83
      %p92 = scmp.eq.s32.totalorder %s25, 0
      %p93 = por %p91, %p92
      %p94 = scmp.ne.s32.totalorder %s82, %s83
      %p95 = scmp.eq.s32.totalorder %s26, 1
      %p96 = por %p94, %p95
      %p98 = scmp.ne.s32.totalorder %s83, %s97
      %p99 = scmp.eq.s32.totalorder %s26, 0
      %p100 = por %p98, %p99
      %s102 = sadd.s32 %s101, 1
      %p105 = scmp.eq.s32.totalorder %s20, 1
      %p106 = scmp.ne.s32.totalorder %s101, %s103
      %p107 = scmp.eq.s32.totalorder %s20, 0
      %p108 = por %p106, %p107
      %p109 = scmp.ne.s32.totalorder %s101, %s103
      %p110 = scmp.eq.s32.totalorder %s25, 1
      %p111 = por %p109, %p110
      %p112 = scmp.ne.s32.totalorder %s103, %s104
      %p113 = scmp.eq.s32.totalorder %s25, 0
      %p114 = por %p112, %p113
      %p115 = scmp.ne.s32.totalorder %s103, %s104
      %p116 = scmp.eq.s32.totalorder %s26, 1
      %p117 = por %p115, %p116
      %p119 = scmp.ne.s32.totalorder %s104, %s118
      %p120 = scmp.eq.s32.totalorder %s26, 0
      %p121 = por %p119, %p120
      %s123 = sadd.s32 %s122, 1
      %p126 = scmp.eq.s32.totalorder %s20, 1
      %p127 = scmp.ne.s32.totalorder %s122, %s124
      %p128 = scmp.eq.s32.totalorder %s20, 0
      %p129 = por %p127, %p128
      %p130 = scmp.ne.s32.totalorder %s122, %s124
      %p131 = scmp.eq.s32.totalorder %s25, 1
      %p132 = por %p130, %p131
      %p133 = scmp.ne.s32.totalorder %s124, %s125
      %p134 = scmp.eq.s32.totalorder %s25, 0
      %p135 = por %p133, %p134
      %p136 = scmp.ne.s32.totalorder %s124, %s125
      %p137 = scmp.eq.s32.totalorder %s26, 1
      %p138 = por %p136, %p137
      %p140 = scmp.ne.s32.totalorder %s125, %s139
      %p141 = scmp.eq.s32.totalorder %s26, 0
      %p142 = por %p140, %p141
      %s144 = sadd.s32 %s143, 1
      %p147 = scmp.eq.s32.totalorder %s20, 1
      %p148 = scmp.ne.s32.totalorder %s143, %s145
      %p149 = scmp.eq.s32.totalorder %s20, 0
      %p150 = por %p148, %p149
      %p151 = scmp.ne.s32.totalorder %s143, %s145
      %p152 = scmp.eq.s32.totalorder %s25, 1
      %p153 = por %p151, %p152
      %p154 = scmp.ne.s32.totalorder %s145, %s146
      %p155 = scmp.eq.s32.totalorder %s25, 0
      %p156 = por %p154, %p155
      %p157 = scmp.ne.s32.totalorder %s145, %s146
      %p158 = scmp.eq.s32.totalorder %s26, 1
      %p159 = por %p157, %p158
      %p161 = scmp.ne.s32.totalorder %s146, %s160
      %p162 = scmp.eq.s32.totalorder %s26, 0
      %p163 = por %p161, %p162
      %s164 = ssub.s32 %s20, %s27
      %p165 = scmp.eq.s32.totalorder %s164, 0
      %s167 = sadd.s32 %s166, 1
      %s168 = scalar_select %p165, %s166, %s167
      %p171 = pneg %p165
      %p172 = scmp.eq.s32.totalorder %s20, 1
      %p173 = por %p171, %p172
      %p174 = scmp.ne.s32.totalorder %s166, %s169
      %p175 = scmp.eq.s32.totalorder %s20, 0
      %p176 = por %p174, %p175
      %p177 = scmp.ne.s32.totalorder %s166, %s169
      %p178 = scmp.eq.s32.totalorder %s25, 1
      %p179 = por %p177, %p178
      %p180 = scmp.ne.s32.totalorder %s169, %s170
      %p181 = scmp.eq.s32.totalorder %s25, 0
      %p182 = por %p180, %p181
      %p183 = scmp.ne.s32.totalorder %s169, %s170
      %p184 = scmp.eq.s32.totalorder %s26, 1
      %p185 = por %p183, %p184
      %p187 = scmp.ne.s32.totalorder %s170, %s186
      %p188 = scmp.eq.s32.totalorder %s26, 0
      %p189 = por %p187, %p188
      %s190 = ssub.s32 %s20, %s27
      %p191 = scmp.eq.s32.totalorder %s190, 0
      %s193 = sadd.s32 %s192, 1
      %s194 = scalar_select %p191, %s192, %s193
      %p197 = pneg %p191
      %p198 = scmp.eq.s32.totalorder %s20, 1
      %p199 = por %p197, %p198
      %p200 = scmp.ne.s32.totalorder %s192, %s195
      %p201 = scmp.eq.s32.totalorder %s20, 0
      %p202 = por %p200, %p201
      %p203 = scmp.ne.s32.totalorder %s192, %s195
      %p204 = scmp.eq.s32.totalorder %s25, 1
      %p205 = por %p203, %p204
      %p206 = scmp.ne.s32.totalorder %s195, %s196
      %p207 = scmp.eq.s32.totalorder %s25, 0
      %p208 = por %p206, %p207
      %p209 = scmp.ne.s32.totalorder %s195, %s196
      %p210 = scmp.eq.s32.totalorder %s26, 1
      %p211 = por %p209, %p210
      %p213 = scmp.ne.s32.totalorder %s196, %s212
      %p214 = scmp.eq.s32.totalorder %s26, 0
      %p215 = por %p213, %p214
      %p216 = scmp.le.s32.totalorder 1, %s20
      %p217 = scmp.lt.s32.totalorder %s20, 3
      %p218 = pnand %p216, %p217
      %p219 = pneg %p218
      // Predicated region
      $region9: #{relation_model_forward.1} parent=5 // pred_check
        _
      $region10: #{relation_model_forward.1} parent=5 // pred_check_branch
        %221 = sbr.rel (%p218) target = $region12
      $region11: #{relation_model_forward.1} parent=5 // pred_region
        %s222 = ssub.s32 %s20, 1
        // Predicated region
        $region13: #{relation_model_forward.1} parent=11 // pred_check
          %p223 = pneg %p93
        $region14: #{relation_model_forward.1} parent=11 // pred_check_branch
          %225 = sbr.rel (%p223) target = $region16
        $region15: #{relation_model_forward.1} parent=11 // pred_region
          _
        $region16: #{relation_model_forward.1} parent=11 // pred_fallthru
          _
        // Predicated region
        $region17: #{relation_model_forward.1} parent=11 // pred_check
          %p226 = pneg %p114
        $region18: #{relation_model_forward.1} parent=11 // pred_check_branch
          %228 = sbr.rel (%p226) target = $region20
        $region19: #{relation_model_forward.1} parent=11 // pred_region
          _
        $region20: #{relation_model_forward.1} parent=11 // pred_fallthru
          _
        // Predicated region
        $region21: #{relation_model_forward.1} parent=11 // pred_check
          %p229 = pneg %p135
        $region22: #{relation_model_forward.1} parent=11 // pred_check_branch
          %231 = sbr.rel (%p229) target = $region24
        $region23: #{relation_model_forward.1} parent=11 // pred_region
          _
        $region24: #{relation_model_forward.1} parent=11 // pred_fallthru
          _
        // Predicated region
        $region25: #{relation_model_forward.1} parent=11 // pred_check
          %p232 = pneg %p156
        $region26: #{relation_model_forward.1} parent=11 // pred_check_branch
          %234 = sbr.rel (%p232) target = $region28
        $region27: #{relation_model_forward.1} parent=11 // pred_region
          _
        $region28: #{relation_model_forward.1} parent=11 // pred_fallthru
          _
      $region12: #{relation_model_forward.1} parent=5 // pred_fallthru
        _
      %p235 = scmp.lt.s32.totalorder %s20, 2
      // Predicated region
      $region29: #{relation_model_forward.1} parent=5 // pred_check
        %p236 = pneg %p235
      $region30: #{relation_model_forward.1} parent=5 // pred_check_branch
        %238 = sbr.rel (%p236) target = $region32
      $region31: #{relation_model_forward.1} parent=5 // pred_region
        // Predicated region
        $region33: #{relation_model_forward.1} parent=31 // pred_check
          %p239 = pneg %p40
        $region34: #{relation_model_forward.1} parent=31 // pred_check_branch
          %241 = sbr.rel (%p239) target = $region36
        $region35: #{relation_model_forward.1} parent=31 // pred_region
          %p242 = scmp.lt.s32.totalorder %s20, 1
          %s243 = scalar_select %p242, %s20, 1
          %s244 = smul.addr %s243, 2
          %s245 = smul.addr %s244, 4
          %s246 = scalar_lea.vmem %s0, %s245
        $region36: #{relation_model_forward.1} parent=31 // pred_fallthru
          _
        // Predicated region
        $region37: #{relation_model_forward.1} parent=31 // pred_check
          %p247 = pneg %p66
        $region38: #{relation_model_forward.1} parent=31 // pred_check_branch
          %249 = sbr.rel (%p247) target = $region40
        $region39: #{relation_model_forward.1} parent=31 // pred_region
          %p250 = scmp.lt.s32.totalorder %s20, 1
          %s251 = scalar_select %p250, %s20, 1
          %s252 = smul.addr %s251, 2
          %s253 = smul.addr %s252, 8
          %s254 = scalar_lea.vmem %s1, %s253
        $region40: #{relation_model_forward.1} parent=31 // pred_fallthru
          _
      $region32: #{relation_model_forward.1} parent=5 // pred_fallthru
        _
      %p255 = scmp.le.s32.totalorder 1, %s20
      %p256 = scmp.lt.s32.totalorder %s20, 3
      %p257 = pnand %p255, %p256
      %p258 = pneg %p257
      // Predicated region
      $region41: #{relation_model_forward.1} parent=5 // pred_check
        _
      $region42: #{relation_model_forward.1} parent=5 // pred_check_branch
        %260 = sbr.rel (%p257) target = $region44
      $region43: #{relation_model_forward.1} parent=5 // pred_region
        %s261 = ssub.s32 %s20, 1
        %p262 = scmp.lt.s32.totalorder %s25, 1
        %s263 = scalar_select %p262, %s25, 1
        %s264 = smul.addr %s263, 2
        %s265 = smul.addr %s264, 4
        %s266 = scalar_lea.vmem %s0, %s265
        %p267 = pneg %p46
        %p268 = pneg %p43
        %p269 = scmp.lt.s32.totalorder %s25, 1
        %s270 = scalar_select %p269, %s25, 1
        %s271 = smul.addr %s270, 2
        %s272 = smul.addr %s271, 8
        %s273 = scalar_lea.vmem %s1, %s272
        %p274 = pneg %p72
        %p275 = pneg %p69
        %p276 = pneg %p93
        %p277 = pneg %p90
        %p278 = pneg %p114
        %p279 = pneg %p111
        %p280 = pneg %p135
        %p281 = pneg %p132
        %p282 = pneg %p156
        %p283 = pneg %p153
        %p284 = pneg %p182
        %p285 = pneg %p179
        %s286 = sand.u32 %s169, 1
        %s287 = scalar_lea.sflag [#allocation3], %s286
        %s288 = sand.u32 %s169, 1
        %s289 = smul.addr %s288, 16
        %s290 = scalar_lea.vmem [#allocation2], %s289
        %p291 = pneg %p208
        %p292 = pneg %p205
        %s293 = sand.u32 %s195, 1
        %s294 = scalar_lea.sflag [#allocation5], %s293
        %s295 = sand.u32 %s195, 1
        %s296 = scalar_lea.vmem [#allocation4], %s295
        %p297 = scmp.lt.s32.totalorder %s25, 1
        %s298 = scalar_select %p297, %s25, 1
        %s299 = smul.addr %s298, 2
        %s300 = smul.addr %s299, 4
        %s301 = scalar_lea.vmem %s0, %s300
        %p302 = scmp.lt.s32.totalorder %s25, 1
        %s303 = scalar_select %p302, %s25, 1
        %s304 = smul.addr %s303, 2
        %s305 = smul.addr %s304, 8
        %s306 = scalar_lea.vmem %s1, %s305
        %v308 = vld [vmem:[%s301] sm:$0xf]
        %v309 = vld [vmem:[%s301 + $0x4] sm:$0xf]
        %v310 = vld [vmem:[%s306] sm:$0xff]
        %v311 = vld [vmem:[%s306 + $0x8] sm:$0xff]
        %v312 = vpack.c.bf16 %v311, %v310
        %v313 = vld [vmem:[%s2] sm:$0xf]
        %v314 = vld [vmem:[%s2 + $0x4] sm:$0xf]
        %v315 = vld [vmem:[%s2 + $0x8] sm:$0xf]
        %v316 = vld [vmem:[%s2 + $0xc] sm:$0xf]
        %v317 = vld [vmem:[%s2 + $0x10] sm:$0xf]
        %v318 = vld [vmem:[%s2 + $0x14] sm:$0xf]
        %v319 = vld [vmem:[%s2 + $0x18] sm:$0xf]
        %v320 = vld [vmem:[%s2 + $0x1c] sm:$0xf]
        %v321 = vld [vmem:[%s2 + $0x20] sm:$0xf]
        %v322 = vld [vmem:[%s2 + $0x24] sm:$0xf]
        %v323 = vld [vmem:[%s2 + $0x28] sm:$0xf]
        %v324 = vld [vmem:[%s2 + $0x2c] sm:$0xf]
        %v325 = vld [vmem:[%s2 + $0x30] sm:$0xf]
        %v326 = vld [vmem:[%s2 + $0x34] sm:$0xf]
        %v327 = vld [vmem:[%s2 + $0x38] sm:$0xf]
        %v328 = vld [vmem:[%s2 + $0x3c] sm:$0xf]
        %v345 = vunpack.c.l.b16 %v313
        %v346 = vunpack.c.l.b16 %v314
        %v347 = vunpack.c.l.b16 %v315
        %v348 = vunpack.c.l.b16 %v316
        %v349 = vunpack.c.l.b16 %v317
        %v350 = vunpack.c.l.b16 %v318
        %v351 = vunpack.c.l.b16 %v319
        %v352 = vunpack.c.l.b16 %v320
        %v353 = vunpack.c.l.b16 %v321
        %v354 = vunpack.c.l.b16 %v322
        %v355 = vunpack.c.l.b16 %v323
        %v356 = vunpack.c.l.b16 %v324
        %v357 = vunpack.c.l.b16 %v325
        %v358 = vunpack.c.l.b16 %v326
        %v359 = vunpack.c.l.b16 %v327
        %v360 = vunpack.c.l.b16 %v328
        %v361 = vpack.c.b16 %v346, %v345
        %v362 = vpack.c.b16 %v348, %v347
        %v363 = vpack.c.b16 %v350, %v349
        %v364 = vpack.c.b16 %v352, %v351
        %v365 = vpack.c.b16 %v354, %v353
        %v366 = vpack.c.b16 %v356, %v355
        %v367 = vpack.c.b16 %v358, %v357
        %v368 = vpack.c.b16 %v360, %v359
        %377 = vmatpush.bf16.msra.mxu0 %v368
        %378 = vmatpush.bf16.msra.mxu0 %v367
        %379 = vmatpush.bf16.msra.mxu0 %v366
        %380 = vmatpush.bf16.msra.mxu0 %v365
        %381 = vmatpush.bf16.msra.mxu0 %v364
        %382 = vmatpush.bf16.msra.mxu0 %v363
        %383 = vmatpush.bf16.msra.mxu0 %v362
        %384 = vmatpush.bf16.msra.mxu0 %v361
        %385 = vmatmul.bf16.gmra.mxu0 %v312
        %v386 = vpop.f32.mrf.mxu0
        %v387 = vadd.f32 0.0, %v386
        %v388 = vpop.f32.mrf.mxu0
        %v389 = vadd.f32 0.0, %v388
        %390 = vdwg.mxu0
        %v391 = vpack.c.bf16 %v389, %v387
        %v392 = vld [vmem:[%s3] sm:$0x1]
        %v394 = vperm.slane %v392, 0
        %v398 = vunpack.c.l.b16 %v308
        %v399 = vunpack.c.l.b16 %v309
        %v400 = vpack.c.b16 %v399, %v398
        %vm401 = vcmask 130048
        %v403 = vsel %vm401, %v400, 0
        %405 = vmatpush.bf16.msra.mxu0 0
        %406 = vmatpush.bf16.msra.mxu0 0
        %407 = vmatpush.bf16.msra.mxu0 0
        %408 = vmatpush.bf16.msra.mxu0 0
        %409 = vmatpush.bf16.msra.mxu0 0
        %410 = vmatpush.bf16.msra.mxu0 0
        %411 = vmatpush.bf16.msra.mxu0 0
        %412 = vmatpush.bf16.msra.mxu0 %v391
        %413 = vmatmul.bf16.gmra.mxu0 %v403
        %v414 = vpop.f32.mrf.mxu0
        %v415 = vadd.f32 %v394, %v414
        %v416 = vpop.f32.mrf.mxu0
        %v417 = vadd.f32 %v394, %v416
        %418 = vdwg.mxu0
        %v419 = vmax.f32 %v415, 0.0
        %v420 = vmax.f32 %v417, 0.0
        %v421 = vadd.f32 %v419, %v310
        %v422 = vadd.f32 %v420, %v311
        %v423 = vpack.c.bf16 %v422, %v421
        %v424 = vld [vmem:[%s4] sm:$0xf]
        %v425 = vld [vmem:[%s4 + $0x4] sm:$0xf]
        %v426 = vld [vmem:[%s4 + $0x8] sm:$0xf]
        %v427 = vld [vmem:[%s4 + $0xc] sm:$0xf]
        %v428 = vld [vmem:[%s4 + $0x10] sm:$0xf]
        %v429 = vld [vmem:[%s4 + $0x14] sm:$0xf]
        %v430 = vld [vmem:[%s4 + $0x18] sm:$0xf]
        %v431 = vld [vmem:[%s4 + $0x1c] sm:$0xf]
        %v432 = vld [vmem:[%s4 + $0x20] sm:$0xf]
        %v433 = vld [vmem:[%s4 + $0x24] sm:$0xf]
        %v434 = vld [vmem:[%s4 + $0x28] sm:$0xf]
        %v435 = vld [vmem:[%s4 + $0x2c] sm:$0xf]
        %v436 = vld [vmem:[%s4 + $0x30] sm:$0xf]
        %v437 = vld [vmem:[%s4 + $0x34] sm:$0xf]
        %v438 = vld [vmem:[%s4 + $0x38] sm:$0xf]
        %v439 = vld [vmem:[%s4 + $0x3c] sm:$0xf]
        %v456 = vunpack.c.l.b16 %v424
        %v457 = vunpack.c.l.b16 %v425
        %v458 = vunpack.c.l.b16 %v426
        %v459 = vunpack.c.l.b16 %v427
        %v460 = vunpack.c.l.b16 %v428
        %v461 = vunpack.c.l.b16 %v429
        %v462 = vunpack.c.l.b16 %v430
        %v463 = vunpack.c.l.b16 %v431
        %v464 = vunpack.c.l.b16 %v432
        %v465 = vunpack.c.l.b16 %v433
        %v466 = vunpack.c.l.b16 %v434
        %v467 = vunpack.c.l.b16 %v435
        %v468 = vunpack.c.l.b16 %v436
        %v469 = vunpack.c.l.b16 %v437
        %v470 = vunpack.c.l.b16 %v438
        %v471 = vunpack.c.l.b16 %v439
        %v472 = vpack.c.b16 %v457, %v456
        %v473 = vpack.c.b16 %v459, %v458
        %v474 = vpack.c.b16 %v461, %v460
        %v475 = vpack.c.b16 %v463, %v462
        %v476 = vpack.c.b16 %v465, %v464
        %v477 = vpack.c.b16 %v467, %v466
        %v478 = vpack.c.b16 %v469, %v468
        %v479 = vpack.c.b16 %v471, %v470
        %488 = vmatpush.bf16.msra.mxu0 %v479
        %489 = vmatpush.bf16.msra.mxu0 %v478
        %490 = vmatpush.bf16.msra.mxu0 %v477
        %491 = vmatpush.bf16.msra.mxu0 %v476
        %492 = vmatpush.bf16.msra.mxu0 %v475
        %493 = vmatpush.bf16.msra.mxu0 %v474
        %494 = vmatpush.bf16.msra.mxu0 %v473
        %495 = vmatpush.bf16.msra.mxu0 %v472
        %496 = vmatmul.bf16.gmra.mxu0 %v423
        %v497 = vpop.f32.mrf.mxu0
        %v498 = vadd.f32 0.0, %v497
        %v499 = vpop.f32.mrf.mxu0
        %v500 = vadd.f32 0.0, %v499
        %501 = vdwg.mxu0
        %v502 = vpack.c.bf16 %v500, %v498
        %v503 = vld [vmem:[%s5] sm:$0x1]
        %v505 = vperm.slane %v503, 0
        %507 = vmatpush.bf16.msra.mxu0 0
        %508 = vmatpush.bf16.msra.mxu0 0
        %509 = vmatpush.bf16.msra.mxu0 0
        %510 = vmatpush.bf16.msra.mxu0 0
        %511 = vmatpush.bf16.msra.mxu0 0
        %512 = vmatpush.bf16.msra.mxu0 0
        %513 = vmatpush.bf16.msra.mxu0 0
        %514 = vmatpush.bf16.msra.mxu0 %v502
        %515 = vmatmul.bf16.gmra.mxu0 %v403
        %v516 = vpop.f32.mrf.mxu0
        %v517 = vadd.f32 %v505, %v516
        %v518 = vpop.f32.mrf.mxu0
        %v519 = vadd.f32 %v505, %v518
        %520 = vdwg.mxu0
        %v521 = vmax.f32 %v517, 0.0
        %v522 = vmax.f32 %v519, 0.0
        %v523 = vadd.f32 %v521, %v421
        %v524 = vadd.f32 %v522, %v422
        %525 = vst [vmem:[%s290] sm:$0xff] %v523
        %526 = vst [vmem:[%s290 + $0x8] sm:$0xff] %v524
        %v527 = vadd.f32 %v523, %v524
        %v528 = vrot.slane %v527, 4
        %v529 = vadd.f32 %v527, %v528
        %v530 = vrot.slane %v529, 2
        %v531 = vadd.f32 %v529, %v530
        %v532 = vrot.slane %v531, 1
        %v533 = vadd.f32 %v531, %v532
        %v534 = vrcp.pop 16.0
        %v535 = vmul.f32 16.0, %v534
        %v536 = vsub.f32 1.0, %v535
        %v537 = vmul.f32 %v534, %v536
        %v538 = vadd.f32 %v534, %v537
        %vm539 = vweird.f32 %v534
        %v540 = vsel %vm539, %v534, %v538
        %v541 = vmul.f32 %v533, %v540
        %542 = vst [vmem:[%s296] sm:$0x1] %v541
        %s543 = sand.u32 %s169, 1
        %s544 = scalar_lea.sflag [#allocation3], %s543
        %s545 = sand.u32 %s169, 1
        %s546 = smul.addr %s545, 16
        %s547 = scalar_lea.vmem [#allocation2], %s546
        %s548 = sand.u32 %s195, 1
        %s549 = scalar_lea.sflag [#allocation5], %s548
        %s550 = sand.u32 %s195, 1
        %s551 = scalar_lea.vmem [#allocation4], %s550
        // Predicated region
        $region45: #{relation_model_forward.1} parent=43 // pred_check
          %p552 = pneg %p179
        $region46: #{relation_model_forward.1} parent=43 // pred_check_branch
          %554 = sbr.rel (%p552) target = $region48
        $region47: #{relation_model_forward.1} parent=43 // pred_region
          %556 = vsyncadd %s544, 0
          %s557 = smul.addr %s25, 2
          %s558 = smul.addr %s557, 8
          %s559 = scalar_lea.hbm %s6, %s558
          %s560 = sshll.u32 %s547, 4
          %s561 = int_to_ptr.vmem [resolvable:$true] %s560
          %s562 = sshll.u32 %s559, 4
          %s563 = int_to_ptr.hbm [resolvable:$true] %s562
          %568 = dma.vmem_to_hbm [thread:$0]  %s561, 256, %s563, %s544, 128, 128, 8
        $region48: #{relation_model_forward.1} parent=43 // pred_fallthru
          _
        // Predicated region
        $region49: #{relation_model_forward.1} parent=43 // pred_check
          %p569 = pneg %p205
        $region50: #{relation_model_forward.1} parent=43 // pred_check_branch
          %571 = sbr.rel (%p569) target = $region52
        $region51: #{relation_model_forward.1} parent=43 // pred_region
          %573 = vsyncadd %s549, 0
          %s574 = scalar_lea.hbm %s7, %s25
          %s576 = sshll.u32 %s551, 4
          %s577 = int_to_ptr.vmem [resolvable:$true] %s576
          %s578 = sshll.u32 %s574, 4
          %s579 = int_to_ptr.hbm [resolvable:$true] %s578
          %581 = dma.vmem_to_hbm [thread:$0]  %s577, 16, %s579, %s549
        $region52: #{relation_model_forward.1} parent=43 // pred_fallthru
          _
      $region44: #{relation_model_forward.1} parent=5 // pred_fallthru
        _
      %p582 = scmp.le.s32.totalorder 2, %s20
      // Predicated region
      $region53: #{relation_model_forward.1} parent=5 // pred_check
        %p583 = pneg %p582
      $region54: #{relation_model_forward.1} parent=5 // pred_check_branch
        %585 = sbr.rel (%p583) target = $region56
      $region55: #{relation_model_forward.1} parent=5 // pred_region
        %s586 = ssub.s32 %s20, 2
        // Predicated region
        $region57: #{relation_model_forward.1} parent=55 // pred_check
          %p587 = pneg %p185
        $region58: #{relation_model_forward.1} parent=55 // pred_check_branch
          %589 = sbr.rel (%p587) target = $region60
        $region59: #{relation_model_forward.1} parent=55 // pred_region
          %s590 = sand.u32 %s170, 1
          %s591 = scalar_lea.sflag [#allocation3], %s590
          %s592 = sand.u32 %s170, 1
          %s593 = smul.addr %s592, 16
          %s594 = scalar_lea.vmem [#allocation2], %s593
          %596 = dma.done %s591, 256
        $region60: #{relation_model_forward.1} parent=55 // pred_fallthru
          _
        // Predicated region
        $region61: #{relation_model_forward.1} parent=55 // pred_check
          %p597 = pneg %p211
        $region62: #{relation_model_forward.1} parent=55 // pred_check_branch
          %599 = sbr.rel (%p597) target = $region64
        $region63: #{relation_model_forward.1} parent=55 // pred_region
          %s600 = sand.u32 %s196, 1
          %s601 = scalar_lea.sflag [#allocation5], %s600
          %s602 = sand.u32 %s196, 1
          %s603 = scalar_lea.vmem [#allocation4], %s602
          %605 = dma.done %s601, 16
        $region64: #{relation_model_forward.1} parent=55 // pred_fallthru
          _
      $region56: #{relation_model_forward.1} parent=5 // pred_fallthru
        _
    $region6: #{relation_model_forward.1} parent=1 // loop_footer
      %s24 = sadd.s32 1, %s20
    $region7: #{relation_model_forward.1} parent=1 // loop_footer_branch
      %19 = sbr.rel target = $region3
    $region8: #{relation_model_forward.1} parent=1 // loop_exit
      _
    %606 = vsyncpa [#allocation3], 1
    %s607 = scalar_lea.sflag [#allocation3], 1
    %608 = vsyncpa %s607, 1
    %609 = vsyncpa [#allocation5], 1
    %s610 = scalar_lea.sflag [#allocation5], 1
    %611 = vsyncpa %s610, 1

</llo_original>
